<compile_context>
chip_gen: v7x
topology: tpu7x:2x2x1
jax: 0.10.0
libtpu: 0.0.40
codegen_flags: <defaults>
</compile_context>

<pallas_src>
import jax
import jax.numpy as jnp
from jax.experimental import pallas as pl
from jax.experimental.pallas import tpu as pltpu


def edge_update_kernel(w2_ref, col_j_ref, rep_ref, a_ref, bneg_ref, edge_ref, out_ref):
    """One (t, row-tile) grid step.

    w2_ref   : SMEM f32[1]           -- edge-channel weight w2
    col_j_ref: VMEM i32[1, NFp]      -- lane -> j index (-1 on padded lanes)
    rep_ref  : VMEM f32[F, NFp]      -- 0/1 replication matrix (loop-invariant)
    a_ref    : VMEM f32[1, TN, F]    -- A[i, f] = (w0 + w1) * x[i, f] + bias
    bneg_ref : VMEM f32[1, 1, NFp]   -- -w1 * x[j, f], lane-dense over (j, f)
    edge_ref : VMEM (1, TN, NFp)     -- edge row tile, lane-dense
    out_ref  : VMEM (1, TN, NFp)
    """
    w2 = w2_ref[0]
    a = a_ref[0]                                  # (TN, F) f32
    e = edge_ref[0].astype(jnp.float32)           # (TN, NFp)

    # Replicate A across the j lane-groups with an exact 0/1 matmul on the
    # otherwise-idle MXU.  HIGHEST precision keeps the f32 operand exact
    # (default precision would truncate to bf16 and drift ~1e-3).
    a_rep = jnp.dot(a, rep_ref[...],
                    preferred_element_type=jnp.float32,
                    precision=jax.lax.Precision.HIGHEST)          # (TN, NFp)

    # pre[r, l] = A[i_r, f_l] - w1 * x[j_l, f_l] + w2 * e[r, l]
    y = jnp.tanh(a_rep + bneg_ref[0] + w2 * e)

    # Zero the diagonal (i == j): (TN,1) row index vs precomputed (1,NFp)
    # lane->j index, single select, no materialized float mask.
    tn = a.shape[0]
    row_i = (pl.program_id(1) * tn
             + jax.lax.broadcasted_iota(jnp.int32, (tn, 1), 0))
    out_ref[0] = jnp.where(row_i == col_j_ref[...], 0.0, y).astype(out_ref.dtype)


def _vmem_budget():
    """Return (vmem_limit_bytes, target_block_bytes), generation aware."""
    phys = None
    try:
        phys = getattr(pltpu.get_tpu_info(), "vmem_capacity_bytes", None)
    except Exception:
        phys = None
    if phys is not None and phys >= 128 * 1024 * 1024:      # v5e / v6e
        return 96 * 1024 * 1024, 8 * 1024 * 1024
    # v7x (64 MiB physical) or unknown: keep 4*block + rep well under ~48 MiB.
    return 48 * 1024 * 1024, 6 * 1024 * 1024


def _pick_row_tile(n_rows, lane_width, itemsize, target_bytes):
    """Largest multiple-of-8 row tile whose (TN, lane_width) block fits the
    byte target; uses a cdiv grid (ragged last tile) so it never depends on
    divisors of n_rows.  Returns n_rows when the whole thing fits (or n_rows
    is too small to split)."""
    row_bytes = lane_width * itemsize
    if n_rows <= 8 or n_rows * row_bytes <= target_bytes:
        return n_rows
    tn = int(target_bytes // row_bytes) // 8 * 8
    return max(8, min(tn, (n_rows // 8) * 8))


def edge_update_forward(node_feats, edge_feats, conv_weight, conv_bias):
    """conv_weight: (1, 3, 1, 1, 1) Conv3d weight; conv_bias: (1,)."""
    T, N, F = node_feats.shape
    assert edge_feats.shape == (T, N, N, F)
    NF = N * F
    out_dtype = edge_feats.dtype
    itemsize = jnp.dtype(out_dtype).itemsize

    # Lane-dense last dim, padded to a multiple of 128 so stores are full
    # width (no masked vst.msk).  No-op when NF is already aligned.
    NFp = -(-NF // 128) * 128
    edge_flat = edge_feats.reshape(T, N, NF)
    if NFp != NF:
        edge_flat = jnp.pad(edge_flat, ((0, 0), (0, 0), (0, NFp - NF)))

    w = conv_weight.reshape(3).astype(jnp.float32)
    b = conv_bias.reshape(()).astype(jnp.float32)
    w2_params = jnp.stack([w[2]])                       # SMEM scalar

    vmem_limit, target_block = _vmem_budget()
    TN = _pick_row_tile(N, NFp, itemsize, target_block)

    # Keep v7x's two TensorCores and the DMA pipeline busy: aim for >= 4 grid
    # steps, but never shrink blocks below ~512 KiB.
    row_bytes = NFp * itemsize
    while (T * (-(-N // TN))) < 4 and TN > 8:
        cand = max(8, ((TN // 2) // 8) * 8)
        if cand >= TN or cand * row_bytes < 512 * 1024:
            break
        TN = cand
    R = -(-N // TN)

    # --- Loop-invariant small operands (hoisted out of the kernel) ---------
    lane = jnp.arange(NFp, dtype=jnp.int32)
    col_j = jnp.where(lane < NF, lane // F, -1).reshape(1, NFp)          # i32
    rep = (lane[None, :] % F) == jnp.arange(F, dtype=jnp.int32)[:, None]
    rep = (rep & (lane[None, :] < NF)).astype(jnp.float32)               # (F, NFp)

    node_f32 = node_feats.astype(jnp.float32)
    a_rows = (w[0] + w[1]) * node_f32 + b                                # (T, N, F)
    if R * TN != N:                                                      # pad ragged rows
        a_rows = jnp.pad(a_rows, ((0, 0), (0, R * TN - N), (0, 0)))
    bneg = (-w[1] * node_f32).reshape(T, 1, NF)
    if NFp != NF:
        bneg = jnp.pad(bneg, ((0, 0), (0, 0), (0, NFp - NF)))

    # Memory-bound: tell XLA so it can overlap surrounding HLO.
    cost = pl.CostEstimate(
        flops=int(2 * T * R * TN * F * NFp + 5 * T * N * NFp),
        transcendentals=int(T * N * NFp),
        bytes_accessed=int(2 * T * N * NFp * itemsize
                           + rep.size * 4 + bneg.size * 4 + a_rows.size * 4),
    )

    out_flat = pl.pallas_call(
        edge_update_kernel,
        out_shape=jax.ShapeDtypeStruct((T, N, NFp), out_dtype),
        grid=(T, R),
        in_specs=[
            pl.BlockSpec(memory_space=pltpu.MemorySpace.SMEM),        # w2
            pl.BlockSpec((1, NFp), lambda t, r: (0, 0)),              # col_j (resident)
            pl.BlockSpec((F, NFp), lambda t, r: (0, 0)),              # rep   (resident)
            pl.BlockSpec((1, TN, F), lambda t, r: (t, r, 0)),         # A row tile
            pl.BlockSpec((1, 1, NFp), lambda t, r: (t, 0, 0)),        # -w1*x (all j)
            pl.BlockSpec((1, TN, NFp), lambda t, r: (t, r, 0)),       # edge row tile
        ],
        out_specs=pl.BlockSpec((1, TN, NFp), lambda t, r: (t, r, 0)),
        compiler_params=pltpu.CompilerParams(
            dimension_semantics=("parallel", "parallel"),
            vmem_limit_bytes=vmem_limit,
        ),
        cost_estimate=cost,
    )(w2_params, col_j, rep, a_rows, bneg, edge_flat)

    if NFp != NF:
        out_flat = out_flat[:, :, :NF]
    return out_flat.reshape(T, N, N, F)


def edge_update_reference(node_feats, edge_feats, conv_weight, conv_bias):
    """Pure-JAX reference mirroring the PyTorch forward."""
    w = conv_weight.reshape(3)
    b = conv_bias.reshape(())
    x_i = node_feats[:, :, None, :]                     # (T, N, 1, F)
    x_j = node_feats[:, None, :, :]                     # (T, 1, N, F)
    pre = w[0] * x_i + w[1] * (x_i - x_j) + w[2] * edge_feats + b
    y = jnp.tanh(pre)
    N = node_feats.shape[1]
    mask = (1.0 - jnp.eye(N, dtype=y.dtype))[None, :, :, None]
    return y * mask


# TODO(synk): nn.Dropout3d is only active when p > 0; the default config (p=0)
# has no dropout, so it is intentionally not implemented in the kernel.


if __name__ == "__main__":
    # Small shapes consistent with the module: T tasks, N samples, F node feats.
    T, N, F = 2, 8, 32
    key = jax.random.PRNGKey(0)
    k1, k2, k3, k4 = jax.random.split(key, 4)

    node_feats = jax.random.normal(k1, (T, N, F), dtype=jnp.float32)
    edge_feats = jax.random.normal(k2, (T, N, N, F), dtype=jnp.float32)

    # Deterministic Conv3d(3 -> 1, kernel 1x1x1, bias=True) parameters.
    conv_weight = jax.random.normal(k3, (1, 3, 1, 1, 1), dtype=jnp.float32) * 0.5
    conv_bias = jax.random.normal(k4, (1,), dtype=jnp.float32) * 0.1

    out = edge_update_forward(node_feats, edge_feats, conv_weight, conv_bias)
    out = jax.block_until_ready(out)

    ref = edge_update_reference(node_feats, edge_feats, conv_weight, conv_bias)
    assert out.shape == (T, N, N, F)
    max_err = float(jnp.max(jnp.abs(out - ref)))
    assert jnp.allclose(out, ref, atol=1e-5, rtol=1e-5), max_err

    print("KERNEL_OK")
</pallas_src>

<mosaic_0001>
module attributes {stable_mosaic.version = 11 : i64} {
  func.func @edge_update_kernel(%arg0: i32, %arg1: i32, %arg2: memref<1xf32, #tpu.memory_space<smem>>, %arg3: memref<1x256xi32, #tpu.memory_space<vmem>>, %arg4: memref<32x256xf32, #tpu.memory_space<vmem>>, %arg5: memref<1x8x32xf32, #tpu.memory_space<vmem>>, %arg6: memref<1x1x256xf32, #tpu.memory_space<vmem>>, %arg7: memref<1x8x256xf32, #tpu.memory_space<vmem>>, %arg8: memref<1x8x256xf32, #tpu.memory_space<vmem>>) attributes {dimension_semantics = [#tpu.dimension_semantics<parallel>, #tpu.dimension_semantics<parallel>], iteration_bounds = array<i64: 2, 1>, scalar_prefetch = 0 : i64, scratch_operands = 0 : i64, tpu.core_type = #tpu.core_type<tc>, window_params = [{transform_indices = @transform_0, window_bounds = array<i64: 1>}, {pipeline_mode = #tpu.pipeline_mode<synchronous>, transform_indices = @transform_1, window_bounds = array<i64: 1, 256>}, {pipeline_mode = #tpu.pipeline_mode<synchronous>, transform_indices = @transform_2, window_bounds = array<i64: 32, 256>}, {transform_indices = @transform_3, window_bounds = array<i64: 1, 8, 32>}, {transform_indices = @transform_4, window_bounds = array<i64: 1, 1, 256>}, {transform_indices = @transform_5, window_bounds = array<i64: 1, 8, 256>}, {transform_indices = @transform_6, window_bounds = array<i64: 1, 8, 256>}]} {
    %c0 = arith.constant 0 : index
    %0 = memref.load %arg2[%c0] : memref<1xf32, #tpu.memory_space<smem>>
    %c0_0 = arith.constant 0 : index
    %c0_1 = arith.constant 0 : index
    %c0_2 = arith.constant 0 : index
    %1 = vector.load %arg5[%c0_0, %c0_1, %c0_2] : memref<1x8x32xf32, #tpu.memory_space<vmem>>, vector<1x8x32xf32>
    %2 = vector.shape_cast %1 : vector<1x8x32xf32> to vector<8x32xf32>
    %c0_3 = arith.constant 0 : index
    %c0_4 = arith.constant 0 : index
    %c0_5 = arith.constant 0 : index
    %3 = vector.load %arg7[%c0_3, %c0_4, %c0_5] : memref<1x8x256xf32, #tpu.memory_space<vmem>>, vector<1x8x256xf32>
    %4 = vector.shape_cast %3 : vector<1x8x256xf32> to vector<8x256xf32>
    %c0_6 = arith.constant 0 : index
    %c0_7 = arith.constant 0 : index
    %5 = vector.load %arg4[%c0_6, %c0_7] : memref<32x256xf32, #tpu.memory_space<vmem>>, vector<32x256xf32>
    %cst = arith.constant dense<0.000000e+00> : vector<8x256xf32>
    %6 = tpu.matmul %2, %5, %cst {dimension_numbers = #tpu.dot_dimension_numbers<[1], [0], [0], [1], [0, 0, 1, 1], [], []>, precision = #tpu.contract_precision<fp32>} : vector<8x32xf32>, vector<32x256xf32>, vector<8x256xf32> -> vector<8x256xf32>
    %c0_8 = arith.constant 0 : index
    %c0_9 = arith.constant 0 : index
    %c0_10 = arith.constant 0 : index
    %7 = vector.load %arg6[%c0_8, %c0_9, %c0_10] : memref<1x1x256xf32, #tpu.memory_space<vmem>>, vector<1x1x256xf32>
    %8 = vector.shape_cast %7 : vector<1x1x256xf32> to vector<1x256xf32>
    %9 = vector.broadcast %8 : vector<1x256xf32> to vector<8x256xf32>
    %10 = arith.addf %6, %9 : vector<8x256xf32>
    %11 = vector.broadcast %0 : f32 to vector<8x256xf32>
    %12 = arith.mulf %11, %4 : vector<8x256xf32>
    %13 = arith.addf %10, %12 : vector<8x256xf32>
    %14 = math.tanh %13 : vector<8x256xf32>
    %c8_i32 = arith.constant 8 : i32
    %15 = arith.muli %arg1, %c8_i32 : i32
    %16 = tpu.iota {dimensions = array<i32: 0>} : vector<8x1xi32>
    %17 = vector.broadcast %15 : i32 to vector<8x1xi32>
    %18 = arith.addi %17, %16 : vector<8x1xi32>
    %c0_11 = arith.constant 0 : index
    %c0_12 = arith.constant 0 : index
    %19 = vector.load %arg3[%c0_11, %c0_12] : memref<1x256xi32, #tpu.memory_space<vmem>>, vector<1x256xi32>
    %20 = vector.broadcast %18 : vector<8x1xi32> to vector<8x256xi32>
    %21 = vector.broadcast %19 : vector<1x256xi32> to vector<8x256xi32>
    %22 = arith.cmpi eq, %20, %21 : vector<8x256xi32>
    %cst_13 = arith.constant 0.000000e+00 : f32
    %23 = vector.broadcast %cst_13 : f32 to vector<8x256xf32>
    %24 = arith.select %22, %23, %14 : vector<8x256xi1>, vector<8x256xf32>
    %c0_14 = arith.constant 0 : index
    %c0_15 = arith.constant 0 : index
    %c0_16 = arith.constant 0 : index
    %25 = vector.load %arg8[%c0_14, %c0_15, %c0_16] : memref<1x8x256xf32, #tpu.memory_space<vmem>>, vector<1x8x256xf32>
    %26 = vector.shape_cast %25 : vector<1x8x256xf32> to vector<8x256xf32>
    %27 = vector.shape_cast %24 : vector<8x256xf32> to vector<1x8x256xf32>
    tpu.vector_store %arg8[%c0_14, %c0_15, %c0_16], %27 {strides = array<i32>} : memref<1x8x256xf32, #tpu.memory_space<vmem>>, vector<1x8x256xf32>,
    return
  }
  func.func @transform_0(%arg0: i32, %arg1: i32) -> i32 {
    %c0_i32 = arith.constant 0 : i32
    %c0_i32_0 = arith.constant 0 : i32
    return %c0_i32 : i32
  }
  func.func @transform_1(%arg0: i32, %arg1: i32) -> (i32, i32) {
    %c0_i32 = arith.constant 0 : i32
    %c0_i32_0 = arith.constant 0 : i32
    %c0_i32_1 = arith.constant 0 : i32
    return %c0_i32, %c0_i32_0 : i32, i32
  }
  func.func @transform_2(%arg0: i32, %arg1: i32) -> (i32, i32) {
    %c0_i32 = arith.constant 0 : i32
    %c0_i32_0 = arith.constant 0 : i32
    %c0_i32_1 = arith.constant 0 : i32
    return %c0_i32, %c0_i32_0 : i32, i32
  }
  func.func @transform_3(%arg0: i32, %arg1: i32) -> (i32, i32, i32) {
    %c0_i32 = arith.constant 0 : i32
    %c0_i32_0 = arith.constant 0 : i32
    return %arg0, %arg1, %c0_i32 : i32, i32, i32
  }
  func.func @transform_4(%arg0: i32, %arg1: i32) -> (i32, i32, i32) {
    %c0_i32 = arith.constant 0 : i32
    %c0_i32_0 = arith.constant 0 : i32
    %c0_i32_1 = arith.constant 0 : i32
    return %arg0, %c0_i32, %c0_i32_0 : i32, i32, i32
  }
  func.func @transform_5(%arg0: i32, %arg1: i32) -> (i32, i32, i32) {
    %c0_i32 = arith.constant 0 : i32
    %c0_i32_0 = arith.constant 0 : i32
    return %arg0, %arg1, %c0_i32 : i32, i32, i32
  }
  func.func @transform_6(%arg0: i32, %arg1: i32) -> (i32, i32, i32) {
    %c0_i32 = arith.constant 0 : i32
    %c0_i32_0 = arith.constant 0 : i32
    return %arg0, %arg1, %c0_i32 : i32, i32, i32
  }
}

</mosaic_0001>

<llo_original>
// kernel: tpu_custom_call.1
$region0: #{tpu_custom_call.1}
  #allocation0 [shape = 'u32[]', space=smem, size = 0x4, offset = 0x4, fixed_abs, tag = 'smem constant byte address 0x4 - core index']
  #allocation1 [shape = 'u32[144,128]{1,0:T(1,128)}', space=vmem, size = 0x12000, scoped, tag = 'internal scratch']
  #allocation2 [shape = 'f32[1]{0:T(128)S(6)}', space=smem, size = 0x200, scoped, tag = 'scoped memory for tpu_custom_call.1']
  %s0 = inlined_call_operand.<no memory space> [shape: f32[1], index: 0, kind: input, shape index: {}]
  %s1 = inlined_call_operand.vmem [shape: s32[1,256], index: 1, kind: input, shape index: {}]
  %s2 = inlined_call_operand.hbm [shape: f32[32,256], index: 2, kind: input, shape index: {}]
  %s3 = inlined_call_operand.hbm [shape: f32[2,8,32], index: 3, kind: input, shape index: {}]
  %s4 = inlined_call_operand.vmem [shape: f32[2,1,256], index: 4, kind: input, shape index: {}]
  %s5 = inlined_call_operand.hbm [shape: f32[2,8,256], index: 5, kind: input, shape index: {}]
  %s6 = inlined_call_operand.hbm [shape: f32[2,8,256], index: 6, kind: output, shape index: {}]
  %s7 = sld [smem:[#allocation0]]
  $region69: #{tpu_custom_call.1} parent=0
    _
  %s9 = ssub.s32 1, %s7
  %s10 = scalar_select 0, %s9, %s7
  %11 = sst [smem:[#allocation2]] %s0
  $region1: #{tpu_custom_call.1} parent=0
    #allocation3 [shape = 'u8[32768]{0}', space=vmem, size = 0x8000, scoped, tag = 'input window, operand 2, single buffered']
    #allocation4 [shape = 's32[2]{0}', space=sflag, size = 0x8, scoped, tag = 'scoped memory for tpu_custom_call.1']
    #allocation5 [shape = 's32[2]{0}', space=sflag, size = 0x8, scoped, tag = 'scoped memory for tpu_custom_call.1']
    #allocation6 [shape = 'u8[8192]{0}', space=vmem, size = 0x2000, scoped, tag = 'input window, operand 3']
    #allocation7 [shape = 's32[2]{0}', space=sflag, size = 0x8, scoped, tag = 'scoped memory for tpu_custom_call.1']
    #allocation8 [shape = 'u8[16384]{0}', space=vmem, size = 0x4000, scoped, tag = 'input window, operand 5']
    #allocation9 [shape = 'u8[16384]{0}', space=vmem, size = 0x4000, scoped, tag = 'output window, operand 0']
    %12 = vsyncpa [#allocation4], 0
    %13 = vsyncpa [#allocation7], 0
    %s14 = scalar_lea.sflag [#allocation7], 1
    %15 = vsyncpa %s14, 0
    %16 = vsyncpa [#allocation5], 0
    %s17 = scalar_lea.sflag [#allocation5], 1
    %18 = vsyncpa %s17, 0
    loop: start=0, step=1, limit=4
    $region2: #{tpu_custom_call.1} parent=1 // loop_pre_header
      _
    $region3: #{tpu_custom_call.1} parent=1 // loop_header
      %s20 = sphi 0, %s24
      %p21 = scmp.ge.s32.totalorder %s20, 4
      %s27 = sphi 0, %s39
      %s28 = sphi 0, %s35
      %s29 = sphi 0, %s27
      %s30 = sphi 0, %s28
      %s31 = sphi 0, %s29
      %s32 = sphi 0, %s30
      %s40 = sphi 0, %s40
      %s42 = sphi 0, %s40
      %s43 = sphi 0, %s42
      %s57 = sphi 0, %s43
      %s61 = sphi 0, %s61
      %s63 = sphi 0, %s61
      %s64 = sphi 0, %s63
      %s78 = sphi 0, %s64
      %s82 = sphi 0, %s82
      %s84 = sphi 0, %s82
      %s85 = sphi 0, %s84
      %s99 = sphi 0, %s85
      %s107 = sphi 0, %s109
      %s110 = sphi 0, %s107
      %s111 = sphi 0, %s110
      %s127 = sphi 0, %s111
      %s133 = sphi 0, %s135
      %s136 = sphi 0, %s133
      %s137 = sphi 0, %s136
      %s153 = sphi 0, %s137
      %s161 = sphi 0, %s163
      %s164 = sphi 0, %s161
      %s165 = sphi 0, %s164
      %s181 = sphi 0, %s165
      %s189 = sphi 0, %s191
      %s192 = sphi 0, %s189
      %s193 = sphi 0, %s192
      %s209 = sphi 0, %s193
    $region4: #{tpu_custom_call.1} parent=1 // loop_header_branch
      %23 = sbr.rel (%p21) target = $region8
    $region5: #{tpu_custom_call.1} parent=1 // loop_body
      %s25 = ssub.s32 %s20, 1
      %s26 = ssub.s32 %s20, 2
      %s33 = sadd.s32 1, %s28
      %p34 = scmp.ge.s32.totalorder %s33, 1
      %s35 = scalar_select %p34, 0, %s33
      %s36 = sadd.s32 1, %s27
      %s37 = scalar_select %p34, %s36, %s27
      %p38 = scmp.ge.s32.totalorder %s37, 2
      %s39 = scalar_select %p38, 0, %s37
      %s41 = sadd.s32 %s40, 1
      %p44 = scmp.eq.s32.totalorder %s20, 1
      %p45 = scmp.ne.s32.totalorder %s40, %s42
      %p46 = scmp.eq.s32.totalorder %s20, 0
      %p47 = por %p45, %p46
      %p48 = scmp.ne.s32.totalorder %s40, %s42
      %p49 = scmp.eq.s32.totalorder %s25, 1
      %p50 = por %p48, %p49
      %p51 = scmp.ne.s32.totalorder %s42, %s43
      %p52 = scmp.eq.s32.totalorder %s25, 0
      %p53 = por %p51, %p52
      %p54 = scmp.ne.s32.totalorder %s42, %s43
      %p55 = scmp.eq.s32.totalorder %s26, 1
      %p56 = por %p54, %p55
      %p58 = scmp.ne.s32.totalorder %s43, %s57
      %p59 = scmp.eq.s32.totalorder %s26, 0
      %p60 = por %p58, %p59
      %s62 = sadd.s32 %s61, 1
      %p65 = scmp.eq.s32.totalorder %s20, 1
      %p66 = scmp.ne.s32.totalorder %s61, %s63
      %p67 = scmp.eq.s32.totalorder %s20, 0
      %p68 = por %p66, %p67
      %p69 = scmp.ne.s32.totalorder %s61, %s63
      %p70 = scmp.eq.s32.totalorder %s25, 1
      %p71 = por %p69, %p70
      %p72 = scmp.ne.s32.totalorder %s63, %s64
      %p73 = scmp.eq.s32.totalorder %s25, 0
      %p74 = por %p72, %p73
      %p75 = scmp.ne.s32.totalorder %s63, %s64
      %p76 = scmp.eq.s32.totalorder %s26, 1
      %p77 = por %p75, %p76
      %p79 = scmp.ne.s32.totalorder %s64, %s78
      %p80 = scmp.eq.s32.totalorder %s26, 0
      %p81 = por %p79, %p80
      %s83 = sadd.s32 %s82, 1
      %p86 = scmp.eq.s32.totalorder %s20, 1
      %p87 = scmp.ne.s32.totalorder %s82, %s84
      %p88 = scmp.eq.s32.totalorder %s20, 0
      %p89 = por %p87, %p88
      %p90 = scmp.ne.s32.totalorder %s82, %s84
      %p91 = scmp.eq.s32.totalorder %s25, 1
      %p92 = por %p90, %p91
      %p93 = scmp.ne.s32.totalorder %s84, %s85
      %p94 = scmp.eq.s32.totalorder %s25, 0
      %p95 = por %p93, %p94
      %p96 = scmp.ne.s32.totalorder %s84, %s85
      %p97 = scmp.eq.s32.totalorder %s26, 1
      %p98 = por %p96, %p97
      %p100 = scmp.ne.s32.totalorder %s85, %s99
      %p101 = scmp.eq.s32.totalorder %s26, 0
      %p102 = por %p100, %p101
      %s103 = ssub.s32 %s27, %s39
      %s104 = ssub.s32 %s28, %s35
      %s105 = sor.u32 %s103, %s104
      %p106 = scmp.eq.s32.totalorder %s105, 0
      %s108 = sadd.s32 %s107, 1
      %s109 = scalar_select %p106, %s107, %s108
      %p112 = pneg %p106
      %p113 = scmp.eq.s32.totalorder %s20, 1
      %p114 = por %p112, %p113
      %p115 = scmp.ne.s32.totalorder %s107, %s110
      %p116 = scmp.eq.s32.totalorder %s20, 0
      %p117 = por %p115, %p116
      %p118 = scmp.ne.s32.totalorder %s107, %s110
      %p119 = scmp.eq.s32.totalorder %s25, 1
      %p120 = por %p118, %p119
      %p121 = scmp.ne.s32.totalorder %s110, %s111
      %p122 = scmp.eq.s32.totalorder %s25, 0
      %p123 = por %p121, %p122
      %p124 = scmp.ne.s32.totalorder %s110, %s111
      %p125 = scmp.eq.s32.totalorder %s26, 1
      %p126 = por %p124, %p125
      %p128 = scmp.ne.s32.totalorder %s111, %s127
      %p129 = scmp.eq.s32.totalorder %s26, 0
      %p130 = por %p128, %p129
      %s131 = ssub.s32 %s27, %s39
      %p132 = scmp.eq.s32.totalorder %s131, 0
      %s134 = sadd.s32 %s133, 1
      %s135 = scalar_select %p132, %s133, %s134
      %p138 = pneg %p132
      %p139 = scmp.eq.s32.totalorder %s20, 1
      %p140 = por %p138, %p139
      %p141 = scmp.ne.s32.totalorder %s133, %s136
      %p142 = scmp.eq.s32.totalorder %s20, 0
      %p143 = por %p141, %p142
      %p144 = scmp.ne.s32.totalorder %s133, %s136
      %p145 = scmp.eq.s32.totalorder %s25, 1
      %p146 = por %p144, %p145
      %p147 = scmp.ne.s32.totalorder %s136, %s137
      %p148 = scmp.eq.s32.totalorder %s25, 0
      %p149 = por %p147, %p148
      %p150 = scmp.ne.s32.totalorder %s136, %s137
      %p151 = scmp.eq.s32.totalorder %s26, 1
      %p152 = por %p150, %p151
      %p154 = scmp.ne.s32.totalorder %s137, %s153
      %p155 = scmp.eq.s32.totalorder %s26, 0
      %p156 = por %p154, %p155
      %s157 = ssub.s32 %s27, %s39
      %s158 = ssub.s32 %s28, %s35
      %s159 = sor.u32 %s157, %s158
      %p160 = scmp.eq.s32.totalorder %s159, 0
      %s162 = sadd.s32 %s161, 1
      %s163 = scalar_select %p160, %s161, %s162
      %p166 = pneg %p160
      %p167 = scmp.eq.s32.totalorder %s20, 1
      %p168 = por %p166, %p167
      %p169 = scmp.ne.s32.totalorder %s161, %s164
      %p170 = scmp.eq.s32.totalorder %s20, 0
      %p171 = por %p169, %p170
      %p172 = scmp.ne.s32.totalorder %s161, %s164
      %p173 = scmp.eq.s32.totalorder %s25, 1
      %p174 = por %p172, %p173
      %p175 = scmp.ne.s32.totalorder %s164, %s165
      %p176 = scmp.eq.s32.totalorder %s25, 0
      %p177 = por %p175, %p176
      %p178 = scmp.ne.s32.totalorder %s164, %s165
      %p179 = scmp.eq.s32.totalorder %s26, 1
      %p180 = por %p178, %p179
      %p182 = scmp.ne.s32.totalorder %s165, %s181
      %p183 = scmp.eq.s32.totalorder %s26, 0
      %p184 = por %p182, %p183
      %s185 = ssub.s32 %s27, %s39
      %s186 = ssub.s32 %s28, %s35
      %s187 = sor.u32 %s185, %s186
      %p188 = scmp.eq.s32.totalorder %s187, 0
      %s190 = sadd.s32 %s189, 1
      %s191 = scalar_select %p188, %s189, %s190
      %p194 = pneg %p188
      %p195 = scmp.eq.s32.totalorder %s20, 1
      %p196 = por %p194, %p195
      %p197 = scmp.ne.s32.totalorder %s189, %s192
      %p198 = scmp.eq.s32.totalorder %s20, 0
      %p199 = por %p197, %p198
      %p200 = scmp.ne.s32.totalorder %s189, %s192
      %p201 = scmp.eq.s32.totalorder %s25, 1
      %p202 = por %p200, %p201
      %p203 = scmp.ne.s32.totalorder %s192, %s193
      %p204 = scmp.eq.s32.totalorder %s25, 0
      %p205 = por %p203, %p204
      %p206 = scmp.ne.s32.totalorder %s192, %s193
      %p207 = scmp.eq.s32.totalorder %s26, 1
      %p208 = por %p206, %p207
      %p210 = scmp.ne.s32.totalorder %s193, %s209
      %p211 = scmp.eq.s32.totalorder %s26, 0
      %p212 = por %p210, %p211
      %p213 = scmp.le.s32.totalorder 1, %s20
      %p214 = scmp.lt.s32.totalorder %s20, 3
      %p215 = pnand %p213, %p214
      %p216 = pneg %p215
      // Predicated region
      $region9: #{tpu_custom_call.1} parent=5 // pred_check
        _
      $region10: #{tpu_custom_call.1} parent=5 // pred_check_branch
        %218 = sbr.rel (%p215) target = $region12
      $region11: #{tpu_custom_call.1} parent=5 // pred_region
        %s219 = ssub.s32 %s20, 1
        // Predicated region
        $region13: #{tpu_custom_call.1} parent=11 // pred_check
          %p220 = pneg %p53
        $region14: #{tpu_custom_call.1} parent=11 // pred_check_branch
          %222 = sbr.rel (%p220) target = $region16
        $region15: #{tpu_custom_call.1} parent=11 // pred_region
          _
        $region16: #{tpu_custom_call.1} parent=11 // pred_fallthru
          _
        // Predicated region
        $region17: #{tpu_custom_call.1} parent=11 // pred_check
          %p223 = pneg %p74
        $region18: #{tpu_custom_call.1} parent=11 // pred_check_branch
          %225 = sbr.rel (%p223) target = $region20
        $region19: #{tpu_custom_call.1} parent=11 // pred_region
          _
        $region20: #{tpu_custom_call.1} parent=11 // pred_fallthru
          _
        // Predicated region
        $region21: #{tpu_custom_call.1} parent=11 // pred_check
          %p226 = pneg %p95
        $region22: #{tpu_custom_call.1} parent=11 // pred_check_branch
          %228 = sbr.rel (%p226) target = $region24
        $region23: #{tpu_custom_call.1} parent=11 // pred_region
          %s230 = ssub.s32 1024, 1024
          %231 = vsyncadd [#allocation4], %s230
          %s232 = sshll.u32 [#allocation3], 4
          %s233 = int_to_ptr.vmem [resolvable:$true] %s232
          %238 = dma.hbm_to_vmem [thread:$0]  %s2, 1024, %s233, [#allocation4], 256, 256, 16
        $region24: #{tpu_custom_call.1} parent=11 // pred_fallthru
          _
      $region12: #{tpu_custom_call.1} parent=5 // pred_fallthru
        _
      %p239 = scmp.lt.s32.totalorder %s20, 2
      // Predicated region
      $region25: #{tpu_custom_call.1} parent=5 // pred_check
        %p240 = pneg %p239
      $region26: #{tpu_custom_call.1} parent=5 // pred_check_branch
        %242 = sbr.rel (%p240) target = $region28
      $region27: #{tpu_custom_call.1} parent=5 // pred_region
        // Predicated region
        $region29: #{tpu_custom_call.1} parent=27 // pred_check
          %p243 = pneg %p117
        $region30: #{tpu_custom_call.1} parent=27 // pred_check_branch
          %245 = sbr.rel (%p243) target = $region32
        $region31: #{tpu_custom_call.1} parent=27 // pred_region
          %s246 = sand.u32 %s20, 1
          %s247 = scalar_lea.sflag [#allocation7], %s246
          %s248 = sand.u32 %s107, 1
          %s249 = smul.addr %s248, 8
          %s250 = scalar_lea.vmem [#allocation6], %s249
          %s252 = ssub.s32 128, 128
          %253 = vsyncadd %s247, %s252
          %s254 = sadd.s32 %s28, %s27
          %s255 = smul.addr %s254, 128
          %s256 = scalar_lea.hbm %s3, %s255
          %s258 = sshll.u32 %s250, 4
          %s259 = int_to_ptr.vmem [resolvable:$true] %s258
          %261 = dma.hbm_to_vmem [thread:$0]  %s256, 128, %s259, %s247
        $region32: #{tpu_custom_call.1} parent=27 // pred_fallthru
          _
        // Predicated region
        $region33: #{tpu_custom_call.1} parent=27 // pred_check
          %p262 = pneg %p143
        $region34: #{tpu_custom_call.1} parent=27 // pred_check_branch
          %264 = sbr.rel (%p262) target = $region36
        $region35: #{tpu_custom_call.1} parent=27 // pred_region
          %p265 = scmp.lt.s32.totalorder %s27, 1
          %s266 = scalar_select %p265, %s27, 1
          %s267 = smul.addr %s266, 2
          %s268 = scalar_lea.vmem %s4, %s267
        $region36: #{tpu_custom_call.1} parent=27 // pred_fallthru
          _
        // Predicated region
        $region37: #{tpu_custom_call.1} parent=27 // pred_check
          %p269 = pneg %p171
        $region38: #{tpu_custom_call.1} parent=27 // pred_check_branch
          %271 = sbr.rel (%p269) target = $region40
        $region39: #{tpu_custom_call.1} parent=27 // pred_region
          %s272 = sand.u32 %s20, 1
          %s273 = scalar_lea.sflag [#allocation7], %s272
          %s274 = sand.u32 %s161, 1
          %s275 = smul.addr %s274, 16
          %s276 = scalar_lea.vmem [#allocation8], %s275
          %s278 = ssub.s32 256, 256
          %279 = vsyncadd %s273, %s278
          %s280 = smul.addr %s28, 2
          %s281 = smul.addr %s27, 2
          %s282 = sadd.s32 %s280, %s281
          %s283 = smul.addr %s282, 128
          %s284 = scalar_lea.hbm %s5, %s283
          %s286 = sshll.u32 %s276, 4
          %s287 = int_to_ptr.vmem [resolvable:$true] %s286
          %289 = dma.hbm_to_vmem [thread:$0]  %s284, 256, %s287, %s273
        $region40: #{tpu_custom_call.1} parent=27 // pred_fallthru
          _
      $region28: #{tpu_custom_call.1} parent=5 // pred_fallthru
        _
      %p290 = scmp.le.s32.totalorder 1, %s20
      %p291 = scmp.lt.s32.totalorder %s20, 3
      %p292 = pnand %p290, %p291
      %p293 = pneg %p292
      // Predicated region
      $region41: #{tpu_custom_call.1} parent=5 // pred_check
        _
      $region42: #{tpu_custom_call.1} parent=5 // pred_check_branch
        %295 = sbr.rel (%p292) target = $region44
      $region43: #{tpu_custom_call.1} parent=5 // pred_region
        %s296 = ssub.s32 %s20, 1
        // Predicated region
        $region45: #{tpu_custom_call.1} parent=43 // pred_check
          %p297 = pneg %p95
        $region46: #{tpu_custom_call.1} parent=43 // pred_check_branch
          %299 = sbr.rel (%p297) target = $region48
        $region47: #{tpu_custom_call.1} parent=43 // pred_region
          %300 = dma.done [#allocation4], 1024
        $region48: #{tpu_custom_call.1} parent=43 // pred_fallthru
          _
        %s301 = sand.u32 %s25, 1
        %s302 = scalar_lea.sflag [#allocation7], %s301
        %s303 = sand.u32 %s110, 1
        %s304 = smul.addr %s303, 8
        %s305 = scalar_lea.vmem [#allocation6], %s304
        // Predicated region
        $region49: #{tpu_custom_call.1} parent=43 // pred_check
          %p306 = pneg %p123
        $region50: #{tpu_custom_call.1} parent=43 // pred_check_branch
          %308 = sbr.rel (%p306) target = $region52
        $region51: #{tpu_custom_call.1} parent=43 // pred_region
          %309 = dma.done %s302, 128
        $region52: #{tpu_custom_call.1} parent=43 // pred_fallthru
          _
        %s310 = sand.u32 %s25, 1
        %s311 = scalar_lea.sflag [#allocation7], %s310
        %s312 = sand.u32 %s164, 1
        %s313 = smul.addr %s312, 16
        %s314 = scalar_lea.vmem [#allocation8], %s313
        // Predicated region
        $region53: #{tpu_custom_call.1} parent=43 // pred_check
          %p315 = pneg %p177
        $region54: #{tpu_custom_call.1} parent=43 // pred_check_branch
          %317 = sbr.rel (%p315) target = $region56
        $region55: #{tpu_custom_call.1} parent=43 // pred_region
          %318 = dma.done %s311, 256
        $region56: #{tpu_custom_call.1} parent=43 // pred_fallthru
          _
        %p319 = pneg %p53
        %p320 = pneg %p50
        %p321 = pneg %p74
        %p322 = pneg %p71
        %p323 = pneg %p95
        %p324 = pneg %p92
        %s325 = sand.u32 %s25, 1
        %s326 = scalar_lea.sflag [#allocation7], %s325
        %s327 = sand.u32 %s110, 1
        %s328 = smul.addr %s327, 8
        %s329 = scalar_lea.vmem [#allocation6], %s328
        %p330 = pneg %p123
        %p331 = pneg %p120
        %p332 = scmp.lt.s32.totalorder %s29, 1
        %s333 = scalar_select %p332, %s29, 1
        %s334 = smul.addr %s333, 2
        %s335 = scalar_lea.vmem %s4, %s334
        %p336 = pneg %p149
        %p337 = pneg %p146
        %s338 = sand.u32 %s25, 1
        %s339 = scalar_lea.sflag [#allocation7], %s338
        %s340 = sand.u32 %s164, 1
        %s341 = smul.addr %s340, 16
        %s342 = scalar_lea.vmem [#allocation8], %s341
        %p343 = pneg %p177
        %p344 = pneg %p174
        %p345 = pneg %p205
        %p346 = pneg %p202
        %s347 = sand.u32 %s192, 1
        %s348 = scalar_lea.sflag [#allocation5], %s347
        %s349 = sand.u32 %s192, 1
        %s350 = smul.addr %s349, 16
        %s351 = scalar_lea.vmem [#allocation9], %s350
        %p352 = scmp.lt.s32.totalorder %s29, 1
        %s353 = scalar_select %p352, %s29, 1
        %s354 = smul.addr %s353, 2
        %s355 = scalar_lea.vmem %s4, %s354
        %s356 = sld [smem:[#allocation2]]
        %v357 = vld [vmem:[%s305] sm:$0xff]
        %v358 = vld [vmem:[%s314] sm:$0xff]
        %v359 = vld [vmem:[%s314 + $0x8] sm:$0xff]
        %v360 = vld [vmem:[#allocation3] sm:$0xff]
        %v361 = vld [vmem:[#allocation3 + $0x8] sm:$0xff]
        %v362 = vld [vmem:[#allocation3 + $0x10] sm:$0xff]
        %v363 = vld [vmem:[#allocation3 + $0x18] sm:$0xff]
        %v364 = vld [vmem:[#allocation3 + $0x20] sm:$0xff]
        %v365 = vld [vmem:[#allocation3 + $0x28] sm:$0xff]
        %v366 = vld [vmem:[#allocation3 + $0x30] sm:$0xff]
        %v367 = vld [vmem:[#allocation3 + $0x38] sm:$0xff]
        %v368 = vld [vmem:[%s355] sm:$0x3]
        %v370 = vlaneseq
        %v371 = vshrl.u32 %v370, 7
        %v372 = vsub.s32 0, %v371
        %v373 = vrot.slane %v368, %v372
        %v374 = vlaneseq
        %v375 = vshrl.u32 %v374, 7
        %v376 = vsub.s32 1, %v375
        %v377 = vrot.slane %v368, %v376
        %vm380 = vcmask 261120
        %v382 = vsel %vm380, %v357, 0
        %v384 = vand.u32 %v361, 4294901760
        %385 = vmatprep.subr.mxu0 %v384
        %v386 = vand.u32 %v360, 4294901760
        %387 = vmatpush1.msra.mxu0 %v386
        %v388 = vand.u32 %v363, 4294901760
        %389 = vmatprep.subr.mxu0 %v388
        %v390 = vand.u32 %v362, 4294901760
        %391 = vmatpush1.msra.mxu0 %v390
        %v392 = vand.u32 %v365, 4294901760
        %393 = vmatprep.subr.mxu0 %v392
        %v394 = vand.u32 %v364, 4294901760
        %395 = vmatpush1.msra.mxu0 %v394
        %v396 = vand.u32 %v367, 4294901760
        %397 = vmatprep.subr.mxu0 %v396
        %v398 = vand.u32 %v366, 4294901760
        %399 = vmatpush1.msra.mxu0 %v398
        %400 = vmatprep.subr.mxu0 0.0
        %401 = vmatpush1.msra.mxu0 0.0
        %402 = vmatprep.subr.mxu0 0.0
        %403 = vmatpush1.msra.mxu0 0.0
        %404 = vmatprep.subr.mxu0 0.0
        %405 = vmatpush1.msra.mxu0 0.0
        %406 = vmatprep.subr.mxu0 0.0
        %407 = vmatpush1.msra.mxu0 0.0
        %408 = vmatprep.subr.mxu0 0.0
        %409 = vmatpush1.msra.mxu0 0.0
        %410 = vmatprep.subr.mxu0 0.0
        %411 = vmatpush1.msra.mxu0 0.0
        %412 = vmatprep.subr.mxu0 0.0
        %413 = vmatpush1.msra.mxu0 0.0
        %414 = vmatprep.subr.mxu0 0.0
        %415 = vmatpush1.msra.mxu0 0.0
        %416 = vmatprep.subr.mxu0 0.0
        %417 = vmatpush1.msra.mxu0 0.0
        %418 = vmatprep.subr.mxu0 0.0
        %419 = vmatpush1.msra.mxu0 0.0
        %420 = vmatprep.subr.mxu0 0.0
        %421 = vmatpush1.msra.mxu0 0.0
        %422 = vmatprep.subr.mxu0 0.0
        %423 = vmatpush1.msra.mxu0 0.0
        %424 = vmatprep.subr.mxu0 0.0
        %425 = vmatpush1.msra.mxu0 0.0
        %426 = vmatprep.subr.mxu0 0.0
        %427 = vmatpush1.msra.mxu0 0.0
        %428 = vmatprep.subr.mxu0 0.0
        %429 = vmatpush1.msra.mxu0 0.0
        %430 = vmatprep.subr.mxu0 0.0
        %431 = vmatpush1.msra.mxu0 0.0
        %432 = vmatprep.subr.mxu0 0.0
        %433 = vmatpush1.msra.mxu0 0.0
        %434 = vmatprep.subr.mxu0 0.0
        %435 = vmatpush1.msra.mxu0 0.0
        %436 = vmatprep.subr.mxu0 0.0
        %437 = vmatpush1.msra.mxu0 0.0
        %438 = vmatprep.subr.mxu0 0.0
        %439 = vmatpush1.msra.mxu0 0.0
        %440 = vmatprep.subr.mxu0 0.0
        %441 = vmatpush1.msra.mxu0 0.0
        %442 = vmatprep.subr.mxu0 0.0
        %443 = vmatpush1.msra.mxu0 0.0
        %444 = vmatprep.subr.mxu0 0.0
        %445 = vmatpush1.msra.mxu0 0.0
        %446 = vmatprep.subr.mxu0 0.0
        %447 = vmatpush1.msra.mxu0 0.0
        %448 = vmatprep.subr.mxu0 0.0
        %449 = vmatpush1.msra.mxu0 0.0
        %450 = vmatprep.subr.mxu0 0.0
        %451 = vmatpush1.msra.mxu0 0.0
        %452 = vmatprep.subr.mxu0 0.0
        %453 = vmatpush1.msra.mxu0 0.0
        %454 = vmatprep.subr.mxu0 0.0
        %455 = vmatpush1.msra.mxu0 0.0
        %456 = vmatprep.mubr.f32.mxu0 0.0
        %v457 = vand.u32 %v382, 4294901760
        %v458 = vsub.f32 %v382, %v457
        %v459 = vand.u32 %v458, 4294901760
        %v460 = vsub.f32 %v458, %v459
        %v461 = vand.u32 %v460, 4294901760
        %462 = vmatmul.mubr.f32.gmra.mrb[0].mxu0 %v461
        %v463 = vpop.f32.mrb[0].mxu0
        %v464 = vadd.f32 %v373, %v463
        %v465 = vpop.f32.mrb[0].mxu0
        %v466 = vadd.f32 %v377, %v465
        %467 = vdwg.mxu0
        %v468 = vand.u32 %v361, 4294901760
        %v469 = vsub.f32 %v361, %v468
        %v470 = vand.u32 %v469, 4294901760
        %v471 = vsub.f32 %v469, %v470
        %v472 = vand.u32 %v471, 4294901760
        %473 = vmatprep.subr.mxu0 %v472
        %v474 = vand.u32 %v360, 4294901760
        %v475 = vsub.f32 %v360, %v474
        %v476 = vand.u32 %v475, 4294901760
        %v477 = vsub.f32 %v475, %v476
        %v478 = vand.u32 %v477, 4294901760
        %479 = vmatpush1.msra.mxu0 %v478
        %v480 = vand.u32 %v363, 4294901760
        %v481 = vsub.f32 %v363, %v480
        %v482 = vand.u32 %v481, 4294901760
        %v483 = vsub.f32 %v481, %v482
        %v484 = vand.u32 %v483, 4294901760
        %485 = vmatprep.subr.mxu0 %v484
        %v486 = vand.u32 %v362, 4294901760
        %v487 = vsub.f32 %v362, %v486
        %v488 = vand.u32 %v487, 4294901760
        %v489 = vsub.f32 %v487, %v488
        %v490 = vand.u32 %v489, 4294901760
        %491 = vmatpush1.msra.mxu0 %v490
        %v492 = vand.u32 %v365, 4294901760
        %v493 = vsub.f32 %v365, %v492
        %v494 = vand.u32 %v493, 4294901760
        %v495 = vsub.f32 %v493, %v494
        %v496 = vand.u32 %v495, 4294901760
        %497 = vmatprep.subr.mxu0 %v496
        %v498 = vand.u32 %v364, 4294901760
        %v499 = vsub.f32 %v364, %v498
        %v500 = vand.u32 %v499, 4294901760
        %v501 = vsub.f32 %v499, %v500
        %v502 = vand.u32 %v501, 4294901760
        %503 = vmatpush1.msra.mxu0 %v502
        %v504 = vand.u32 %v367, 4294901760
        %v505 = vsub.f32 %v367, %v504
        %v506 = vand.u32 %v505, 4294901760
        %v507 = vsub.f32 %v505, %v506
        %v508 = vand.u32 %v507, 4294901760
        %509 = vmatprep.subr.mxu0 %v508
        %v510 = vand.u32 %v366, 4294901760
        %v511 = vsub.f32 %v366, %v510
        %v512 = vand.u32 %v511, 4294901760
        %v513 = vsub.f32 %v511, %v512
        %v514 = vand.u32 %v513, 4294901760
        %515 = vmatpush1.msra.mxu0 %v514
        %516 = vmatprep.subr.mxu0 0.0
        %517 = vmatpush1.msra.mxu0 0.0
        %518 = vmatprep.subr.mxu0 0.0
        %519 = vmatpush1.msra.mxu0 0.0
        %520 = vmatprep.subr.mxu0 0.0
        %521 = vmatpush1.msra.mxu0 0.0
        %522 = vmatprep.subr.mxu0 0.0
        %523 = vmatpush1.msra.mxu0 0.0
        %524 = vmatprep.subr.mxu0 0.0
        %525 = vmatpush1.msra.mxu0 0.0
        %526 = vmatprep.subr.mxu0 0.0
        %527 = vmatpush1.msra.mxu0 0.0
        %528 = vmatprep.subr.mxu0 0.0
        %529 = vmatpush1.msra.mxu0 0.0
        %530 = vmatprep.subr.mxu0 0.0
        %531 = vmatpush1.msra.mxu0 0.0
        %532 = vmatprep.subr.mxu0 0.0
        %533 = vmatpush1.msra.mxu0 0.0
        %534 = vmatprep.subr.mxu0 0.0
        %535 = vmatpush1.msra.mxu0 0.0
        %536 = vmatprep.subr.mxu0 0.0
        %537 = vmatpush1.msra.mxu0 0.0
        %538 = vmatprep.subr.mxu0 0.0
        %539 = vmatpush1.msra.mxu0 0.0
        %540 = vmatprep.subr.mxu0 0.0
        %541 = vmatpush1.msra.mxu0 0.0
        %542 = vmatprep.subr.mxu0 0.0
        %543 = vmatpush1.msra.mxu0 0.0
        %544 = vmatprep.subr.mxu0 0.0
        %545 = vmatpush1.msra.mxu0 0.0
        %546 = vmatprep.subr.mxu0 0.0
        %547 = vmatpush1.msra.mxu0 0.0
        %548 = vmatprep.subr.mxu0 0.0
        %549 = vmatpush1.msra.mxu0 0.0
        %550 = vmatprep.subr.mxu0 0.0
        %551 = vmatpush1.msra.mxu0 0.0
        %552 = vmatprep.subr.mxu0 0.0
        %553 = vmatpush1.msra.mxu0 0.0
        %554 = vmatprep.subr.mxu0 0.0
        %555 = vmatpush1.msra.mxu0 0.0
        %556 = vmatprep.subr.mxu0 0.0
        %557 = vmatpush1.msra.mxu0 0.0
        %558 = vmatprep.subr.mxu0 0.0
        %559 = vmatpush1.msra.mxu0 0.0
        %560 = vmatprep.subr.mxu0 0.0
        %561 = vmatpush1.msra.mxu0 0.0
        %562 = vmatprep.subr.mxu0 0.0
        %563 = vmatpush1.msra.mxu0 0.0
        %564 = vmatprep.subr.mxu0 0.0
        %565 = vmatpush1.msra.mxu0 0.0
        %566 = vmatprep.subr.mxu0 0.0
        %567 = vmatpush1.msra.mxu0 0.0
        %568 = vmatprep.subr.mxu0 0.0
        %569 = vmatpush1.msra.mxu0 0.0
        %570 = vmatprep.subr.mxu0 0.0
        %571 = vmatpush1.msra.mxu0 0.0
        %572 = vmatprep.mubr.f32.mxu0 0.0
        %v573 = vand.u32 %v382, 4294901760
        %574 = vmatmul.mubr.f32.gmra.mrb[0].mxu0 %v573
        %v575 = vpop.f32.mrb[0].mxu0
        %v576 = vadd.f32 %v464, %v575
        %v577 = vpop.f32.mrb[0].mxu0
        %v578 = vadd.f32 %v466, %v577
        %579 = vdwg.mxu0
        %v580 = vand.u32 %v361, 4294901760
        %v581 = vsub.f32 %v361, %v580
        %582 = vmatprep.subr.mxu0 %v581
        %v583 = vand.u32 %v360, 4294901760
        %v584 = vsub.f32 %v360, %v583
        %585 = vmatpush1.msra.mxu0 %v584
        %v586 = vand.u32 %v363, 4294901760
        %v587 = vsub.f32 %v363, %v586
        %588 = vmatprep.subr.mxu0 %v587
        %v589 = vand.u32 %v362, 4294901760
        %v590 = vsub.f32 %v362, %v589
        %591 = vmatpush1.msra.mxu0 %v590
        %v592 = vand.u32 %v365, 4294901760
        %v593 = vsub.f32 %v365, %v592
        %594 = vmatprep.subr.mxu0 %v593
        %v595 = vand.u32 %v364, 4294901760
        %v596 = vsub.f32 %v364, %v595
        %597 = vmatpush1.msra.mxu0 %v596
        %v598 = vand.u32 %v367, 4294901760
        %v599 = vsub.f32 %v367, %v598
        %600 = vmatprep.subr.mxu0 %v599
        %v601 = vand.u32 %v366, 4294901760
        %v602 = vsub.f32 %v366, %v601
        %603 = vmatpush1.msra.mxu0 %v602
        %604 = vmatprep.subr.mxu0 0.0
        %605 = vmatpush1.msra.mxu0 0.0
        %606 = vmatprep.subr.mxu0 0.0
        %607 = vmatpush1.msra.mxu0 0.0
        %608 = vmatprep.subr.mxu0 0.0
        %609 = vmatpush1.msra.mxu0 0.0
        %610 = vmatprep.subr.mxu0 0.0
        %611 = vmatpush1.msra.mxu0 0.0
        %612 = vmatprep.subr.mxu0 0.0
        %613 = vmatpush1.msra.mxu0 0.0
        %614 = vmatprep.subr.mxu0 0.0
        %615 = vmatpush1.msra.mxu0 0.0
        %616 = vmatprep.subr.mxu0 0.0
        %617 = vmatpush1.msra.mxu0 0.0
        %618 = vmatprep.subr.mxu0 0.0
        %619 = vmatpush1.msra.mxu0 0.0
        %620 = vmatprep.subr.mxu0 0.0
        %621 = vmatpush1.msra.mxu0 0.0
        %622 = vmatprep.subr.mxu0 0.0
        %623 = vmatpush1.msra.mxu0 0.0
        %624 = vmatprep.subr.mxu0 0.0
        %625 = vmatpush1.msra.mxu0 0.0
        %626 = vmatprep.subr.mxu0 0.0
        %627 = vmatpush1.msra.mxu0 0.0
        %628 = vmatprep.subr.mxu0 0.0
        %629 = vmatpush1.msra.mxu0 0.0
        %630 = vmatprep.subr.mxu0 0.0
        %631 = vmatpush1.msra.mxu0 0.0
        %632 = vmatprep.subr.mxu0 0.0
        %633 = vmatpush1.msra.mxu0 0.0
        %634 = vmatprep.subr.mxu0 0.0
        %635 = vmatpush1.msra.mxu0 0.0
        %636 = vmatprep.subr.mxu0 0.0
        %637 = vmatpush1.msra.mxu0 0.0
        %638 = vmatprep.subr.mxu0 0.0
        %639 = vmatpush1.msra.mxu0 0.0
        %640 = vmatprep.subr.mxu0 0.0
        %641 = vmatpush1.msra.mxu0 0.0
        %642 = vmatprep.subr.mxu0 0.0
        %643 = vmatpush1.msra.mxu0 0.0
        %644 = vmatprep.subr.mxu0 0.0
        %645 = vmatpush1.msra.mxu0 0.0
        %646 = vmatprep.subr.mxu0 0.0
        %647 = vmatpush1.msra.mxu0 0.0
        %648 = vmatprep.subr.mxu0 0.0
        %649 = vmatpush1.msra.mxu0 0.0
        %650 = vmatprep.subr.mxu0 0.0
        %651 = vmatpush1.msra.mxu0 0.0
        %652 = vmatprep.subr.mxu0 0.0
        %653 = vmatpush1.msra.mxu0 0.0
        %654 = vmatprep.subr.mxu0 0.0
        %655 = vmatpush1.msra.mxu0 0.0
        %656 = vmatprep.subr.mxu0 0.0
        %657 = vmatpush1.msra.mxu0 0.0
        %658 = vmatprep.subr.mxu0 0.0
        %659 = vmatpush1.msra.mxu0 0.0
        %660 = vmatprep.mubr.f32.mxu0 0.0
        %v661 = vand.u32 %v382, 4294901760
        %v662 = vsub.f32 %v382, %v661
        %663 = vmatmul.mubr.f32.gmra.mrb[0].mxu0 %v662
        %v664 = vpop.f32.mrb[0].mxu0
        %v665 = vadd.f32 %v576, %v664
        %v666 = vpop.f32.mrb[0].mxu0
        %v667 = vadd.f32 %v578, %v666
        %668 = vdwg.mxu0
        %v669 = vand.u32 %v361, 4294901760
        %670 = vmatprep.subr.mxu0 %v669
        %v671 = vand.u32 %v360, 4294901760
        %672 = vmatpush1.msra.mxu0 %v671
        %v673 = vand.u32 %v363, 4294901760
        %674 = vmatprep.subr.mxu0 %v673
        %v675 = vand.u32 %v362, 4294901760
        %676 = vmatpush1.msra.mxu0 %v675
        %v677 = vand.u32 %v365, 4294901760
        %678 = vmatprep.subr.mxu0 %v677
        %v679 = vand.u32 %v364, 4294901760
        %680 = vmatpush1.msra.mxu0 %v679
        %v681 = vand.u32 %v367, 4294901760
        %682 = vmatprep.subr.mxu0 %v681
        %v683 = vand.u32 %v366, 4294901760
        %684 = vmatpush1.msra.mxu0 %v683
        %685 = vmatprep.subr.mxu0 0.0
        %686 = vmatpush1.msra.mxu0 0.0
        %687 = vmatprep.subr.mxu0 0.0
        %688 = vmatpush1.msra.mxu0 0.0
        %689 = vmatprep.subr.mxu0 0.0
        %690 = vmatpush1.msra.mxu0 0.0
        %691 = vmatprep.subr.mxu0 0.0
        %692 = vmatpush1.msra.mxu0 0.0
        %693 = vmatprep.subr.mxu0 0.0
        %694 = vmatpush1.msra.mxu0 0.0
        %695 = vmatprep.subr.mxu0 0.0
        %696 = vmatpush1.msra.mxu0 0.0
        %697 = vmatprep.subr.mxu0 0.0
        %698 = vmatpush1.msra.mxu0 0.0
        %699 = vmatprep.subr.mxu0 0.0
        %700 = vmatpush1.msra.mxu0 0.0
        %701 = vmatprep.subr.mxu0 0.0
        %702 = vmatpush1.msra.mxu0 0.0
        %703 = vmatprep.subr.mxu0 0.0
        %704 = vmatpush1.msra.mxu0 0.0
        %705 = vmatprep.subr.mxu0 0.0
        %706 = vmatpush1.msra.mxu0 0.0
        %707 = vmatprep.subr.mxu0 0.0
        %708 = vmatpush1.msra.mxu0 0.0
        %709 = vmatprep.subr.mxu0 0.0
        %710 = vmatpush1.msra.mxu0 0.0
        %711 = vmatprep.subr.mxu0 0.0
        %712 = vmatpush1.msra.mxu0 0.0
        %713 = vmatprep.subr.mxu0 0.0
        %714 = vmatpush1.msra.mxu0 0.0
        %715 = vmatprep.subr.mxu0 0.0
        %716 = vmatpush1.msra.mxu0 0.0
        %717 = vmatprep.subr.mxu0 0.0
        %718 = vmatpush1.msra.mxu0 0.0
        %719 = vmatprep.subr.mxu0 0.0
        %720 = vmatpush1.msra.mxu0 0.0
        %721 = vmatprep.subr.mxu0 0.0
        %722 = vmatpush1.msra.mxu0 0.0
        %723 = vmatprep.subr.mxu0 0.0
        %724 = vmatpush1.msra.mxu0 0.0
        %725 = vmatprep.subr.mxu0 0.0
        %726 = vmatpush1.msra.mxu0 0.0
        %727 = vmatprep.subr.mxu0 0.0
        %728 = vmatpush1.msra.mxu0 0.0
        %729 = vmatprep.subr.mxu0 0.0
        %730 = vmatpush1.msra.mxu0 0.0
        %731 = vmatprep.subr.mxu0 0.0
        %732 = vmatpush1.msra.mxu0 0.0
        %733 = vmatprep.subr.mxu0 0.0
        %734 = vmatpush1.msra.mxu0 0.0
        %735 = vmatprep.subr.mxu0 0.0
        %736 = vmatpush1.msra.mxu0 0.0
        %737 = vmatprep.subr.mxu0 0.0
        %738 = vmatpush1.msra.mxu0 0.0
        %739 = vmatprep.subr.mxu0 0.0
        %740 = vmatpush1.msra.mxu0 0.0
        %741 = vmatprep.mubr.f32.mxu0 0.0
        %v742 = vand.u32 %v382, 4294901760
        %v743 = vsub.f32 %v382, %v742
        %v744 = vand.u32 %v743, 4294901760
        %745 = vmatmul.mubr.f32.gmra.mrb[0].mxu0 %v744
        %v746 = vpop.f32.mrb[0].mxu0
        %v747 = vadd.f32 %v665, %v746
        %v748 = vpop.f32.mrb[0].mxu0
        %v749 = vadd.f32 %v667, %v748
        %750 = vdwg.mxu0
        %v751 = vand.u32 %v361, 4294901760
        %v752 = vsub.f32 %v361, %v751
        %v753 = vand.u32 %v752, 4294901760
        %754 = vmatprep.subr.mxu0 %v753
        %v755 = vand.u32 %v360, 4294901760
        %v756 = vsub.f32 %v360, %v755
        %v757 = vand.u32 %v756, 4294901760
        %758 = vmatpush1.msra.mxu0 %v757
        %v759 = vand.u32 %v363, 4294901760
        %v760 = vsub.f32 %v363, %v759
        %v761 = vand.u32 %v760, 4294901760
        %762 = vmatprep.subr.mxu0 %v761
        %v763 = vand.u32 %v362, 4294901760
        %v764 = vsub.f32 %v362, %v763
        %v765 = vand.u32 %v764, 4294901760
        %766 = vmatpush1.msra.mxu0 %v765
        %v767 = vand.u32 %v365, 4294901760
        %v768 = vsub.f32 %v365, %v767
        %v769 = vand.u32 %v768, 4294901760
        %770 = vmatprep.subr.mxu0 %v769
        %v771 = vand.u32 %v364, 4294901760
        %v772 = vsub.f32 %v364, %v771
        %v773 = vand.u32 %v772, 4294901760
        %774 = vmatpush1.msra.mxu0 %v773
        %v775 = vand.u32 %v367, 4294901760
        %v776 = vsub.f32 %v367, %v775
        %v777 = vand.u32 %v776, 4294901760
        %778 = vmatprep.subr.mxu0 %v777
        %v779 = vand.u32 %v366, 4294901760
        %v780 = vsub.f32 %v366, %v779
        %v781 = vand.u32 %v780, 4294901760
        %782 = vmatpush1.msra.mxu0 %v781
        %783 = vmatprep.subr.mxu0 0.0
        %784 = vmatpush1.msra.mxu0 0.0
        %785 = vmatprep.subr.mxu0 0.0
        %786 = vmatpush1.msra.mxu0 0.0
        %787 = vmatprep.subr.mxu0 0.0
        %788 = vmatpush1.msra.mxu0 0.0
        %789 = vmatprep.subr.mxu0 0.0
        %790 = vmatpush1.msra.mxu0 0.0
        %791 = vmatprep.subr.mxu0 0.0
        %792 = vmatpush1.msra.mxu0 0.0
        %793 = vmatprep.subr.mxu0 0.0
        %794 = vmatpush1.msra.mxu0 0.0
        %795 = vmatprep.subr.mxu0 0.0
        %796 = vmatpush1.msra.mxu0 0.0
        %797 = vmatprep.subr.mxu0 0.0
        %798 = vmatpush1.msra.mxu0 0.0
        %799 = vmatprep.subr.mxu0 0.0
        %800 = vmatpush1.msra.mxu0 0.0
        %801 = vmatprep.subr.mxu0 0.0
        %802 = vmatpush1.msra.mxu0 0.0
        %803 = vmatprep.subr.mxu0 0.0
        %804 = vmatpush1.msra.mxu0 0.0
        %805 = vmatprep.subr.mxu0 0.0
        %806 = vmatpush1.msra.mxu0 0.0
        %807 = vmatprep.subr.mxu0 0.0
        %808 = vmatpush1.msra.mxu0 0.0
        %809 = vmatprep.subr.mxu0 0.0
        %810 = vmatpush1.msra.mxu0 0.0
        %811 = vmatprep.subr.mxu0 0.0
        %812 = vmatpush1.msra.mxu0 0.0
        %813 = vmatprep.subr.mxu0 0.0
        %814 = vmatpush1.msra.mxu0 0.0
        %815 = vmatprep.subr.mxu0 0.0
        %816 = vmatpush1.msra.mxu0 0.0
        %817 = vmatprep.subr.mxu0 0.0
        %818 = vmatpush1.msra.mxu0 0.0
        %819 = vmatprep.subr.mxu0 0.0
        %820 = vmatpush1.msra.mxu0 0.0
        %821 = vmatprep.subr.mxu0 0.0
        %822 = vmatpush1.msra.mxu0 0.0
        %823 = vmatprep.subr.mxu0 0.0
        %824 = vmatpush1.msra.mxu0 0.0
        %825 = vmatprep.subr.mxu0 0.0
        %826 = vmatpush1.msra.mxu0 0.0
        %827 = vmatprep.subr.mxu0 0.0
        %828 = vmatpush1.msra.mxu0 0.0
        %829 = vmatprep.subr.mxu0 0.0
        %830 = vmatpush1.msra.mxu0 0.0
        %831 = vmatprep.subr.mxu0 0.0
        %832 = vmatpush1.msra.mxu0 0.0
        %833 = vmatprep.subr.mxu0 0.0
        %834 = vmatpush1.msra.mxu0 0.0
        %835 = vmatprep.subr.mxu0 0.0
        %836 = vmatpush1.msra.mxu0 0.0
        %837 = vmatprep.subr.mxu0 0.0
        %838 = vmatpush1.msra.mxu0 0.0
        %839 = vmatprep.mubr.f32.mxu0 0.0
        %v840 = vand.u32 %v382, 4294901760
        %841 = vmatmul.mubr.f32.gmra.mrb[0].mxu0 %v840
        %v842 = vpop.f32.mrb[0].mxu0
        %v843 = vadd.f32 %v747, %v842
        %v844 = vpop.f32.mrb[0].mxu0
        %v845 = vadd.f32 %v749, %v844
        %846 = vdwg.mxu0
        %v847 = vand.u32 %v361, 4294901760
        %848 = vmatprep.subr.mxu0 %v847
        %v849 = vand.u32 %v360, 4294901760
        %850 = vmatpush1.msra.mxu0 %v849
        %v851 = vand.u32 %v363, 4294901760
        %852 = vmatprep.subr.mxu0 %v851
        %v853 = vand.u32 %v362, 4294901760
        %854 = vmatpush1.msra.mxu0 %v853
        %v855 = vand.u32 %v365, 4294901760
        %856 = vmatprep.subr.mxu0 %v855
        %v857 = vand.u32 %v364, 4294901760
        %858 = vmatpush1.msra.mxu0 %v857
        %v859 = vand.u32 %v367, 4294901760
        %860 = vmatprep.subr.mxu0 %v859
        %v861 = vand.u32 %v366, 4294901760
        %862 = vmatpush1.msra.mxu0 %v861
        %863 = vmatprep.subr.mxu0 0.0
        %864 = vmatpush1.msra.mxu0 0.0
        %865 = vmatprep.subr.mxu0 0.0
        %866 = vmatpush1.msra.mxu0 0.0
        %867 = vmatprep.subr.mxu0 0.0
        %868 = vmatpush1.msra.mxu0 0.0
        %869 = vmatprep.subr.mxu0 0.0
        %870 = vmatpush1.msra.mxu0 0.0
        %871 = vmatprep.subr.mxu0 0.0
        %872 = vmatpush1.msra.mxu0 0.0
        %873 = vmatprep.subr.mxu0 0.0
        %874 = vmatpush1.msra.mxu0 0.0
        %875 = vmatprep.subr.mxu0 0.0
        %876 = vmatpush1.msra.mxu0 0.0
        %877 = vmatprep.subr.mxu0 0.0
        %878 = vmatpush1.msra.mxu0 0.0
        %879 = vmatprep.subr.mxu0 0.0
        %880 = vmatpush1.msra.mxu0 0.0
        %881 = vmatprep.subr.mxu0 0.0
        %882 = vmatpush1.msra.mxu0 0.0
        %883 = vmatprep.subr.mxu0 0.0
        %884 = vmatpush1.msra.mxu0 0.0
        %885 = vmatprep.subr.mxu0 0.0
        %886 = vmatpush1.msra.mxu0 0.0
        %887 = vmatprep.subr.mxu0 0.0
        %888 = vmatpush1.msra.mxu0 0.0
        %889 = vmatprep.subr.mxu0 0.0
        %890 = vmatpush1.msra.mxu0 0.0
        %891 = vmatprep.subr.mxu0 0.0
        %892 = vmatpush1.msra.mxu0 0.0
        %893 = vmatprep.subr.mxu0 0.0
        %894 = vmatpush1.msra.mxu0 0.0
        %895 = vmatprep.subr.mxu0 0.0
        %896 = vmatpush1.msra.mxu0 0.0
        %897 = vmatprep.subr.mxu0 0.0
        %898 = vmatpush1.msra.mxu0 0.0
        %899 = vmatprep.subr.mxu0 0.0
        %900 = vmatpush1.msra.mxu0 0.0
        %901 = vmatprep.subr.mxu0 0.0
        %902 = vmatpush1.msra.mxu0 0.0
        %903 = vmatprep.subr.mxu0 0.0
        %904 = vmatpush1.msra.mxu0 0.0
        %905 = vmatprep.subr.mxu0 0.0
        %906 = vmatpush1.msra.mxu0 0.0
        %907 = vmatprep.subr.mxu0 0.0
        %908 = vmatpush1.msra.mxu0 0.0
        %909 = vmatprep.subr.mxu0 0.0
        %910 = vmatpush1.msra.mxu0 0.0
        %911 = vmatprep.subr.mxu0 0.0
        %912 = vmatpush1.msra.mxu0 0.0
        %913 = vmatprep.subr.mxu0 0.0
        %914 = vmatpush1.msra.mxu0 0.0
        %915 = vmatprep.subr.mxu0 0.0
        %916 = vmatpush1.msra.mxu0 0.0
        %917 = vmatprep.subr.mxu0 0.0
        %918 = vmatpush1.msra.mxu0 0.0
        %919 = vmatprep.mubr.f32.mxu0 0.0
        %v920 = vand.u32 %v382, 4294901760
        %921 = vmatmul.mubr.f32.gmra.mrb[0].mxu0 %v920
        %v922 = vpop.f32.mrb[0].mxu0
        %v923 = vadd.f32 %v843, %v922
        %v924 = vpop.f32.mrb[0].mxu0
        %v925 = vadd.f32 %v845, %v924
        %926 = vdwg.mxu0
        %v927 = vstv %s356
        %v928 = vmul.f32 %v927, %v358
        %v929 = vmul.f32 %v927, %v359
        %v930 = vadd.f32 %v923, %v928
        %v931 = vadd.f32 %v925, %v929
        %v932 = vtanh.pop %v930
        %v933 = vtanh.pop %v931
        %s934 = smul.u32 %s30, 8
        %v935 = vlaneseq
        %v936 = vshrl.u32 %v935, 7
        %v937 = vstv %s934
        %v938 = vadd.s32 %v937, %v936
        %v939 = vld [vmem:[%s1] sm:$0x3]
        %v940 = vlaneseq
        %v941 = vshrl.u32 %v940, 7
        %v942 = vsub.s32 0, %v941
        %v943 = vrot.slane %v939, %v942
        %v944 = vlaneseq
        %v945 = vshrl.u32 %v944, 7
        %v946 = vsub.s32 1, %v945
        %v947 = vrot.slane %v939, %v946
        %vm948 = vcmp.eq.s32.totalorder %v938, %v943
        %vm949 = vcmp.eq.s32.totalorder %v938, %v947
        %v950 = vsel %vm948, 0.0, %v932
        %v951 = vsel %vm949, 0.0, %v933
        %952 = vst [vmem:[%s351] sm:$0xff] %v950
        %953 = vst [vmem:[%s351 + $0x8] sm:$0xff] %v951
        %s954 = sand.u32 %s192, 1
        %s955 = scalar_lea.sflag [#allocation5], %s954
        %s956 = sand.u32 %s192, 1
        %s957 = smul.addr %s956, 16
        %s958 = scalar_lea.vmem [#allocation9], %s957
        // Predicated region
        $region57: #{tpu_custom_call.1} parent=43 // pred_check
          %p959 = pneg %p202
        $region58: #{tpu_custom_call.1} parent=43 // pred_check_branch
          %961 = sbr.rel (%p959) target = $region60
        $region59: #{tpu_custom_call.1} parent=43 // pred_region
          %s963 = ssub.s32 256, 256
          %964 = vsyncadd %s955, %s963
          %s965 = smul.addr %s30, 2
          %s966 = smul.addr %s29, 2
          %s967 = sadd.s32 %s965, %s966
          %s968 = smul.addr %s967, 128
          %s969 = scalar_lea.hbm %s6, %s968
          %s971 = sshll.u32 %s958, 4
          %s972 = int_to_ptr.vmem [resolvable:$true] %s971
          %974 = dma.vmem_to_hbm [thread:$0]  %s972, 256, %s969, %s955
        $region60: #{tpu_custom_call.1} parent=43 // pred_fallthru
          _
      $region44: #{tpu_custom_call.1} parent=5 // pred_fallthru
        _
      %p975 = scmp.le.s32.totalorder 2, %s20
      // Predicated region
      $region61: #{tpu_custom_call.1} parent=5 // pred_check
        %p976 = pneg %p975
      $region62: #{tpu_custom_call.1} parent=5 // pred_check_branch
        %978 = sbr.rel (%p976) target = $region64
      $region63: #{tpu_custom_call.1} parent=5 // pred_region
        %s979 = ssub.s32 %s20, 2
        // Predicated region
        $region65: #{tpu_custom_call.1} parent=63 // pred_check
          %p980 = pneg %p208
        $region66: #{tpu_custom_call.1} parent=63 // pred_check_branch
          %982 = sbr.rel (%p980) target = $region68
        $region67: #{tpu_custom_call.1} parent=63 // pred_region
          %s983 = sand.u32 %s193, 1
          %s984 = scalar_lea.sflag [#allocation5], %s983
          %s985 = sand.u32 %s193, 1
          %s986 = smul.addr %s985, 16
          %s987 = scalar_lea.vmem [#allocation9], %s986
          %988 = dma.done %s984, 256
        $region68: #{tpu_custom_call.1} parent=63 // pred_fallthru
          _
      $region64: #{tpu_custom_call.1} parent=5 // pred_fallthru
        _
    $region6: #{tpu_custom_call.1} parent=1 // loop_footer
      %s24 = sadd.s32 1, %s20
    $region7: #{tpu_custom_call.1} parent=1 // loop_footer_branch
      %19 = sbr.rel target = $region3
    $region8: #{tpu_custom_call.1} parent=1 // loop_exit
      _
    %989 = vsyncpa [#allocation4], 1
    %s990 = scalar_lea.sflag [#allocation4], 1
    %991 = vsyncpa %s990, 1
    %992 = vsyncpa [#allocation7], 1
    %s993 = scalar_lea.sflag [#allocation7], 1
    %994 = vsyncpa %s993, 1
    %995 = vsyncpa [#allocation5], 1
    %s996 = scalar_lea.sflag [#allocation5], 1
    %997 = vsyncpa %s996, 1

</llo_original>
